<compile_context>
chip_gen: v7x
topology: tpu7x:2x2x1
jax: 0.10.0
libtpu: 0.0.40
codegen_flags: <defaults>
</compile_context>

<pallas_src>
import functools

import jax
import jax.numpy as jnp
from jax.experimental import pallas as pl
from jax.experimental.pallas import tpu as pltpu


def _mish_kernel(x_ref, o_ref, *, approx: bool):
    x = x_ref[...].astype(jnp.float32)
    # e = exp(min(x, 20)); tanh(softplus(x)) = e*(e+2) / (e*(e+2) + 2).
    # For x > 20 the clamp makes num + 2 == num in f32, so t == 1.0 exactly and
    # y == x (PyTorch softplus threshold semantics) -- no select needed.
    e = jnp.exp(jnp.minimum(x, 20.0))
    num = e * (e + 2.0)
    den = num + 2.0
    if approx:
        t = num * pl.reciprocal(den, approx=True)   # EUP-only; ~1e-3 rel err
    else:
        t = num / den
    o_ref[...] = (x * t).astype(o_ref.dtype)


_TARGET_BLOCK_BYTES = 4 * 1024 * 1024   # ~4 MiB per input block; 16 MiB total
                                        # double-buffered (in + out).
_VMEM_LIMIT_BYTES = 48 << 20            # above v5e's 16 MiB scoped default,
                                        # below v7x's 64 MiB physical VMEM.
_MIN_KERNEL_ELEMS = 1024                # below this, launch overhead dominates.


def _choose_layout(n: int, itemsize: int):
    """Pick (width, rows, row_tile) for a flat length-n array, or None if no
    pad-free lane-dense layout exists (caller falls back to plain XLA)."""
    sub = max(8, 32 // itemsize)         # sublane multiple: 8 f32, 16 bf16
    width = None
    # Any multiple of 128 gives unmasked lane-dense stores; search widest first
    # (catches non-power-of-two products like 24*40*... or 7*7*C).
    for w in range(4096, 127, -128):
        if n % w == 0:
            width = w
            break
    if width is None:
        return None
    rows = n // width

    # Row tile targeting ~_TARGET_BLOCK_BYTES per block, multiple of `sub`.
    tr = max(sub, (_TARGET_BLOCK_BYTES // (width * itemsize)) // sub * sub)
    if tr >= rows:
        tr = rows                        # block == full dims is always legal
        if rows >= 2 * sub:
            # Enough work: split into two balanced steps so the "parallel"
            # axis can shard across v7x's two TensorCores.
            tr = max(sub, ((rows + 1) // 2 + sub - 1) // sub * sub)
    return width, rows, tr


def _mish_jnp(x: jax.Array) -> jax.Array:
    """Plain-XLA fallback for tiny / ragged sizes (single fused elementwise)."""
    xf = x.astype(jnp.float32)
    e = jnp.exp(jnp.minimum(xf, 20.0))
    num = e * (e + 2.0)
    return (xf * (num / (num + 2.0))).astype(x.dtype)


def mish(x: jax.Array, *, approx_reciprocal: bool = False) -> jax.Array:
    """Apply Mish elementwise. Any shape / float dtype; compute in f32."""
    orig_shape = x.shape
    orig_dtype = x.dtype
    n = x.size
    itemsize = jnp.dtype(orig_dtype).itemsize

    layout = _choose_layout(n, itemsize) if n >= _MIN_KERNEL_ELEMS else None
    if layout is None:
        # Tiny or ragged size: XLA's fused elementwise is already HBM-bound and
        # avoids the old pad + slice path (which tripled HBM traffic).
        return _mish_jnp(x)

    width, rows, tr = layout
    x2d = x.reshape(rows, width)

    kernel = functools.partial(_mish_kernel, approx=approx_reciprocal)
    out2d = pl.pallas_call(
        kernel,
        out_shape=jax.ShapeDtypeStruct((rows, width), orig_dtype),
        grid_spec=pltpu.PrefetchScalarGridSpec(
            num_scalar_prefetch=0,
            grid=(pl.cdiv(rows, tr),),
            in_specs=[pl.BlockSpec((tr, width), lambda i: (i, 0))],
            out_specs=pl.BlockSpec((tr, width), lambda i: (i, 0)),
        ),
        compiler_params=pltpu.CompilerParams(
            dimension_semantics=("parallel",),
            vmem_limit_bytes=_VMEM_LIMIT_BYTES,
        ),
        cost_estimate=pl.CostEstimate(
            flops=6 * n,
            transcendentals=n,
            bytes_accessed=2 * n * itemsize,
        ),
    )(x2d)

    return out2d.reshape(orig_shape)


def _mish_ref(x):
    # Pure-JAX reference mirroring torch: x * tanh(softplus(x)) with the
    # PyTorch softplus threshold of 20 (independent of the fused kernel form).
    sp = jnp.where(x > 20.0, x, jnp.log1p(jnp.exp(jnp.minimum(x, 20.0))))
    return x * jnp.tanh(sp)


if __name__ == "__main__":
    key = jax.random.PRNGKey(0)
    k0, k1, k2 = jax.random.split(key, 3)

    # Primary check: NCHW shape implied by the module (batch=2, C=4, 16x16).
    x = jax.random.normal(k0, (2, 4, 16, 16), dtype=jnp.float32) * 3.0
    y = mish(x)
    jax.block_until_ready(y)
    assert y.shape == x.shape and y.dtype == x.dtype
    assert jnp.allclose(y, _mish_ref(x), atol=1e-5, rtol=1e-5)

    # Non-power-of-two size -> exercises the widened multiple-of-128 width
    # search (5760 elems -> 1920-lane slab, no pad/slice).
    x2 = jax.random.normal(k1, (2, 3, 24, 40), dtype=jnp.float32) * 3.0
    y2 = mish(x2)
    jax.block_until_ready(y2)
    assert jnp.allclose(y2, _mish_ref(x2), atol=1e-5, rtol=1e-5)

    # Medium size -> exercises the multi-step, megacore-parallel cdiv grid.
    x3 = jax.random.normal(k2, (2, 16, 64, 64), dtype=jnp.float32) * 3.0
    y3 = mish(x3)
    jax.block_until_ready(y3)
    assert jnp.allclose(y3, _mish_ref(x3), atol=1e-5, rtol=1e-5)

    print("KERNEL_OK")
</pallas_src>

<mosaic_0001>
module attributes {stable_mosaic.version = 11 : i64} {
  func.func @_mish_kernel(%arg0: i32, %arg1: memref<1x2048xf32, #tpu.memory_space<vmem>>, %arg2: memref<1x2048xf32, #tpu.memory_space<vmem>>) attributes {dimension_semantics = [#tpu.dimension_semantics<parallel>], iteration_bounds = array<i64: 1>, scalar_prefetch = 0 : i64, scratch_operands = 0 : i64, tpu.core_type = #tpu.core_type<tc>, window_params = [{transform_indices = @transform_0, window_bounds = array<i64: 1, 2048>}, {transform_indices = @transform_1, window_bounds = array<i64: 1, 2048>}]} {
    %c0 = arith.constant 0 : index
    %c0_0 = arith.constant 0 : index
    %0 = vector.load %arg1[%c0, %c0_0] : memref<1x2048xf32, #tpu.memory_space<vmem>>, vector<1x2048xf32>
    %cst = arith.constant 2.000000e+01 : f32
    %1 = vector.broadcast %cst : f32 to vector<1x2048xf32>
    %2 = arith.minimumf %0, %1 : vector<1x2048xf32>
    %3 = math.exp %2 : vector<1x2048xf32>
    %cst_1 = arith.constant 2.000000e+00 : f32
    %4 = vector.broadcast %cst_1 : f32 to vector<1x2048xf32>
    %5 = arith.addf %3, %4 : vector<1x2048xf32>
    %6 = arith.mulf %3, %5 : vector<1x2048xf32>
    %cst_2 = arith.constant 2.000000e+00 : f32
    %7 = vector.broadcast %cst_2 : f32 to vector<1x2048xf32>
    %8 = arith.addf %6, %7 : vector<1x2048xf32>
    %9 = arith.divf %6, %8 : vector<1x2048xf32>
    %10 = arith.mulf %0, %9 : vector<1x2048xf32>
    %c0_3 = arith.constant 0 : index
    %c0_4 = arith.constant 0 : index
    %11 = vector.load %arg2[%c0_3, %c0_4] : memref<1x2048xf32, #tpu.memory_space<vmem>>, vector<1x2048xf32>
    tpu.vector_store %arg2[%c0_3, %c0_4], %10 {strides = array<i32>} : memref<1x2048xf32, #tpu.memory_space<vmem>>, vector<1x2048xf32>,
    return
  }
  func.func @transform_0(%arg0: i32) -> (i32, i32) {
    %c0_i32 = arith.constant 0 : i32
    %c0_i32_0 = arith.constant 0 : i32
    return %arg0, %c0_i32 : i32, i32
  }
  func.func @transform_1(%arg0: i32) -> (i32, i32) {
    %c0_i32 = arith.constant 0 : i32
    %c0_i32_0 = arith.constant 0 : i32
    return %arg0, %c0_i32 : i32, i32
  }
}

</mosaic_0001>

<llo_original>
// kernel: tpu_custom_call.1
$region0: #{tpu_custom_call.1}
  #allocation0 [shape = 'u32[]', space=smem, size = 0x4, offset = 0x4, fixed_abs, tag = 'smem constant byte address 0x4 - core index']
  #allocation1 [shape = 'u32[144,128]{1,0:T(1,128)}', space=vmem, size = 0x12000, scoped, tag = 'internal scratch']
  %s0 = inlined_call_operand.hbm [shape: f32[1,2048], index: 0, kind: input, shape index: {}]
  %s1 = inlined_call_operand.hbm [shape: f32[1,2048], index: 1, kind: output, shape index: {}]
  %s2 = sld [smem:[#allocation0]]
  $region18: #{tpu_custom_call.1} parent=0
    _
  %s4 = ssub.s32 1, %s2
  %s5 = scalar_select 0, %s4, %s2
  $region1: #{tpu_custom_call.1} parent=0
    #allocation2 [shape = 'u8[8192]{0}', space=vmem, size = 0x2000, scoped, tag = 'input window, operand 0, single buffered']
    #allocation3 [shape = 's32[1]{0}', space=sflag, size = 0x4, scoped, tag = 'scoped memory for tpu_custom_call.1']
    #allocation4 [shape = 's32[1]{0}', space=sflag, size = 0x4, scoped, tag = 'scoped memory for tpu_custom_call.1']
    #allocation5 [shape = 'u8[8192]{0}', space=vmem, size = 0x2000, scoped, tag = 'output window, operand 0, single buffered']
    %6 = vsyncpa [#allocation3], 0
    %7 = vsyncpa [#allocation4], 0
    // Predicated region
    $region2: #{tpu_custom_call.1} parent=1 // pred_check
      _
    $region3: #{tpu_custom_call.1} parent=1 // pred_check_branch
      %9 = sbr.rel (0) target = $region5
    $region4: #{tpu_custom_call.1} parent=1 // pred_region
      %s11 = ssub.s32 256, 256
      %12 = vsyncadd [#allocation3], %s11
      %s14 = sshll.u32 [#allocation2], 4
      %s15 = int_to_ptr.vmem [resolvable:$true] %s14
      %17 = dma.hbm_to_vmem [thread:$0]  %s0, 256, %s15, [#allocation3]
    $region5: #{tpu_custom_call.1} parent=1 // pred_fallthru
      _
    // Predicated region
    $region6: #{tpu_custom_call.1} parent=1 // pred_check
      _
    $region7: #{tpu_custom_call.1} parent=1 // pred_check_branch
      %19 = sbr.rel (0) target = $region9
    $region8: #{tpu_custom_call.1} parent=1 // pred_region
      %20 = dma.done [#allocation3], 256
    $region9: #{tpu_custom_call.1} parent=1 // pred_fallthru
      _
    %v21 = vld [vmem:[#allocation2] sm:$0xff]
    %v22 = vld [vmem:[#allocation2 + $0x8] sm:$0xff]
    %v23 = vmin.f32 %v21, 20.0
    %v24 = vmin.f32 %v22, 20.0
    %v25 = vmul.f32 %v23, 1.442695
    %v26 = vpow.pop %v25
    %v27 = vmul.f32 %v24, 1.442695
    %v28 = vpow.pop %v27
    %v29 = vadd.f32 %v26, 2.0
    %v30 = vadd.f32 %v28, 2.0
    %v31 = vmul.f32 %v26, %v29
    %v32 = vmul.f32 %v28, %v30
    %v33 = vadd.f32 %v31, 2.0
    %v34 = vadd.f32 %v32, 2.0
    %v35 = vrcp.pop %v33
    %v36 = vmul.f32 %v31, %v35
    %v37 = vrcp.pop %v34
    %v38 = vmul.f32 %v32, %v37
    %v39 = vmul.f32 %v21, %v36
    %v40 = vmul.f32 %v22, %v38
    %41 = vst [vmem:[#allocation5] sm:$0xff] %v39
    %42 = vst [vmem:[#allocation5 + $0x8] sm:$0xff] %v40
    // Predicated region
    $region10: #{tpu_custom_call.1} parent=1 // pred_check
      _
    $region11: #{tpu_custom_call.1} parent=1 // pred_check_branch
      %44 = sbr.rel (0) target = $region13
    $region12: #{tpu_custom_call.1} parent=1 // pred_region
      %s46 = ssub.s32 256, 256
      %47 = vsyncadd [#allocation4], %s46
      %s49 = sshll.u32 [#allocation5], 4
      %s50 = int_to_ptr.vmem [resolvable:$true] %s49
      %52 = dma.vmem_to_hbm [thread:$0]  %s50, 256, %s1, [#allocation4]
    $region13: #{tpu_custom_call.1} parent=1 // pred_fallthru
      _
    // Predicated region
    $region14: #{tpu_custom_call.1} parent=1 // pred_check
      _
    $region15: #{tpu_custom_call.1} parent=1 // pred_check_branch
      %54 = sbr.rel (0) target = $region17
    $region16: #{tpu_custom_call.1} parent=1 // pred_region
      %55 = dma.done [#allocation4], 256
    $region17: #{tpu_custom_call.1} parent=1 // pred_fallthru
      _
    %56 = vsyncpa [#allocation3], 1
    %57 = vsyncpa [#allocation4], 1

</llo_original>
